<compile_context>
chip_gen: v7x
topology: tpu7x:2x2x1
jax: 0.10.0
libtpu: 0.0.40
codegen_flags: <defaults>
</compile_context>

<pallas_src>
import math

import jax
import jax.numpy as jnp
from jax.experimental import pallas as pl
from jax.experimental.pallas import tpu as pltpu

HIDDEN_LOGICAL = 100
HIDDEN_PAD = 128  # lane-dense hidden width; padding is zero-filled


def _mlp_kernel(x_ref, w1_ref, b1_ref, w2_ref, b2_ref, w3_ref, b3_ref, o_ref):
    x = x_ref[...]          # (blk, 3)  f32
    w1 = w1_ref[...]        # (3, 128)  f32

    # --- Layer 1 on the VPU: K=3 contraction as broadcast multiply-adds. ---
    h1 = (x[:, 0:1] * w1[0:1, :]
          + x[:, 1:2] * w1[1:2, :]
          + x[:, 2:3] * w1[2:3, :]
          + b1_ref[...])
    h1 = jnp.tanh(h1)                                     # (blk, 128) f32

    # --- Layer 2: bf16 MXU dot, f32 accumulate, f32 tanh. ---
    h2 = jnp.tanh(
        jnp.dot(h1.astype(jnp.bfloat16), w2_ref[...],
                preferred_element_type=jnp.float32)
        + b2_ref[...])                                    # (blk, 128) f32

    # --- Layer 3: bf16 MXU dot, f32 accumulate. ---
    logits = (
        jnp.dot(h2.astype(jnp.bfloat16), w3_ref[...],
                preferred_element_type=jnp.float32)
        + b3_ref[...])                                    # (blk, 2) f32

    # --- 2-class log_softmax, pairwise (no cross-lane reductions), f32. ---
    l0 = logits[:, 0:1]
    l1 = logits[:, 1:2]
    m = jnp.maximum(l0, l1)
    lse = m + jnp.log(jnp.exp(l0 - m) + jnp.exp(l1 - m))
    o_ref[...] = logits - lse


def _round_up(n, m):
    return (n + m - 1) // m * m


def net_forward(x, params, *, block_b=512):
    """x: (B, 3) float32 -> (B, 1, 2) log-probabilities."""
    w1, b1, w2, b2, w3, b3 = params
    B = x.shape[0]
    H = w1.shape[1]
    n_out = w3.shape[1]

    # bf16 weights for the MXU dots (layer 1 stays f32 on the VPU).
    w2b = w2.astype(jnp.bfloat16)
    w3b = w3.astype(jnp.bfloat16)

    # Batch tiling: block of up to `block_b` rows, padded to a whole grid.
    blk = min(block_b, _round_up(B, 8))
    b_pad = _round_up(B, blk)
    if b_pad != B:
        x = jnp.pad(x, ((0, b_pad - B), (0, 0)))
    grid = (b_pad // blk,)

    def resident(shape):
        # Weights/biases: same block every grid step -> fetched once, VMEM-resident.
        return pl.BlockSpec(shape, lambda i: (0, 0))

    out = pl.pallas_call(
        _mlp_kernel,
        out_shape=jax.ShapeDtypeStruct((b_pad, n_out), jnp.float32),
        grid=grid,
        in_specs=[
            pl.BlockSpec((blk, 3), lambda i: (i, 0)),   # x: tiled over batch
            resident((3, H)),                           # w1 (f32)
            resident((1, H)),                           # b1
            resident((H, H)),                           # w2 (bf16)
            resident((1, H)),                           # b2
            resident((H, n_out)),                       # w3 (bf16)
            resident((1, n_out)),                       # b3
        ],
        out_specs=pl.BlockSpec((blk, n_out), lambda i: (i, 0)),
        compiler_params=pltpu.CompilerParams(
            dimension_semantics=("parallel",)),
    )(x, w1, b1, w2b, b2, w3b, b3)

    # Drop batch padding; unsqueeze(1) done in the wrapper.
    return out[:B, None, :]


def init_params(key):
    """Torch nn.Linear default init (U[-1/sqrt(fan_in), 1/sqrt(fan_in)]).

    Weights stored as (in_features, out_features); hidden dim zero-padded to
    128 so all kernel tiles are lane-dense (forward value is unchanged).
    """
    dims = [(3, HIDDEN_LOGICAL), (HIDDEN_LOGICAL, HIDDEN_LOGICAL), (HIDDEN_LOGICAL, 2)]
    keys = jax.random.split(key, 2 * len(dims))
    ws, bs = [], []
    for i, (fan_in, fan_out) in enumerate(dims):
        bound = 1.0 / math.sqrt(fan_in)
        ws.append(jax.random.uniform(
            keys[2 * i], (fan_in, fan_out), jnp.float32, -bound, bound))
        bs.append(jax.random.uniform(
            keys[2 * i + 1], (1, fan_out), jnp.float32, -bound, bound))

    pad = HIDDEN_PAD - HIDDEN_LOGICAL
    w1 = jnp.pad(ws[0], ((0, 0), (0, pad)))
    b1 = jnp.pad(bs[0], ((0, 0), (0, pad)))
    w2 = jnp.pad(ws[1], ((0, pad), (0, pad)))
    b2 = jnp.pad(bs[1], ((0, 0), (0, pad)))
    w3 = jnp.pad(ws[2], ((0, pad), (0, 0)))
    b3 = bs[2]
    return (w1, b1, w2, b2, w3, b3)


def net_reference(x, params):
    """Pure-JAX f32 reference (padding columns are zero, so identical net)."""
    w1, b1, w2, b2, w3, b3 = params
    h1 = jnp.tanh(x @ w1 + b1)
    h2 = jnp.tanh(h1 @ w2 + b2)
    logits = h2 @ w3 + b3
    return jax.nn.log_softmax(logits, axis=-1)[:, None, :]


if __name__ == "__main__":
    key = jax.random.PRNGKey(0)
    pkey, xkey = jax.random.split(key)

    params = init_params(pkey)
    x = jax.random.normal(xkey, (8, 3), jnp.float32)  # batch=8, in_features=3

    y = net_forward(x, params)
    jax.block_until_ready(y)

    # Shape and valid log-softmax (rows sum to 1 in prob space).
    assert y.shape == (8, 1, 2), y.shape
    probs_sum = jnp.sum(jnp.exp(y), axis=2)
    assert bool(jnp.all(jnp.abs(probs_sum - 1.0) < 1e-5))

    # Match pure-JAX reference (loose tolerance: layers 2/3 run in bf16).
    y_ref = net_reference(x, params)
    max_err = float(jnp.max(jnp.abs(y - y_ref)))
    assert max_err < 0.1, max_err

    print("KERNEL_OK")
</pallas_src>

<mosaic_0001>
module attributes {stable_mosaic.version = 11 : i64} {
  func.func @_mlp_kernel(%arg0: i32, %arg1: memref<8x3xf32, #tpu.memory_space<vmem>>, %arg2: memref<3x128xf32, #tpu.memory_space<vmem>>, %arg3: memref<1x128xf32, #tpu.memory_space<vmem>>, %arg4: memref<128x128xbf16, #tpu.memory_space<vmem>>, %arg5: memref<1x128xf32, #tpu.memory_space<vmem>>, %arg6: memref<128x2xbf16, #tpu.memory_space<vmem>>, %arg7: memref<1x2xf32, #tpu.memory_space<vmem>>, %arg8: memref<8x2xf32, #tpu.memory_space<vmem>>) attributes {dimension_semantics = [#tpu.dimension_semantics<parallel>], iteration_bounds = array<i64: 1>, scalar_prefetch = 0 : i64, scratch_operands = 0 : i64, tpu.core_type = #tpu.core_type<tc>, window_params = [{transform_indices = @transform_0, window_bounds = array<i64: 8, 3>}, {pipeline_mode = #tpu.pipeline_mode<synchronous>, transform_indices = @transform_1, window_bounds = array<i64: 3, 128>}, {pipeline_mode = #tpu.pipeline_mode<synchronous>, transform_indices = @transform_2, window_bounds = array<i64: 1, 128>}, {pipeline_mode = #tpu.pipeline_mode<synchronous>, transform_indices = @transform_3, window_bounds = array<i64: 128, 128>}, {pipeline_mode = #tpu.pipeline_mode<synchronous>, transform_indices = @transform_4, window_bounds = array<i64: 1, 128>}, {pipeline_mode = #tpu.pipeline_mode<synchronous>, transform_indices = @transform_5, window_bounds = array<i64: 128, 2>}, {pipeline_mode = #tpu.pipeline_mode<synchronous>, transform_indices = @transform_6, window_bounds = array<i64: 1, 2>}, {transform_indices = @transform_7, window_bounds = array<i64: 8, 2>}]} {
    %c0 = arith.constant 0 : index
    %c0_0 = arith.constant 0 : index
    %0 = vector.load %arg1[%c0, %c0_0] : memref<8x3xf32, #tpu.memory_space<vmem>>, vector<8x3xf32>
    %c0_1 = arith.constant 0 : index
    %c0_2 = arith.constant 0 : index
    %1 = vector.load %arg2[%c0_1, %c0_2] : memref<3x128xf32, #tpu.memory_space<vmem>>, vector<3x128xf32>
    %2 = vector.extract_strided_slice %0 {offsets = [0, 0], sizes = [8, 1], strides = [1, 1]} : vector<8x3xf32> to vector<8x1xf32>
    %3 = vector.extract_strided_slice %1 {offsets = [0, 0], sizes = [1, 128], strides = [1, 1]} : vector<3x128xf32> to vector<1x128xf32>
    %4 = vector.broadcast %2 : vector<8x1xf32> to vector<8x128xf32>
    %5 = vector.broadcast %3 : vector<1x128xf32> to vector<8x128xf32>
    %6 = arith.mulf %4, %5 : vector<8x128xf32>
    %7 = vector.extract_strided_slice %0 {offsets = [0, 1], sizes = [8, 1], strides = [1, 1]} : vector<8x3xf32> to vector<8x1xf32>
    %8 = vector.extract_strided_slice %1 {offsets = [1, 0], sizes = [1, 128], strides = [1, 1]} : vector<3x128xf32> to vector<1x128xf32>
    %9 = vector.broadcast %7 : vector<8x1xf32> to vector<8x128xf32>
    %10 = vector.broadcast %8 : vector<1x128xf32> to vector<8x128xf32>
    %11 = arith.mulf %9, %10 : vector<8x128xf32>
    %12 = arith.addf %6, %11 : vector<8x128xf32>
    %13 = vector.extract_strided_slice %0 {offsets = [0, 2], sizes = [8, 1], strides = [1, 1]} : vector<8x3xf32> to vector<8x1xf32>
    %14 = vector.extract_strided_slice %1 {offsets = [2, 0], sizes = [1, 128], strides = [1, 1]} : vector<3x128xf32> to vector<1x128xf32>
    %15 = vector.broadcast %13 : vector<8x1xf32> to vector<8x128xf32>
    %16 = vector.broadcast %14 : vector<1x128xf32> to vector<8x128xf32>
    %17 = arith.mulf %15, %16 : vector<8x128xf32>
    %18 = arith.addf %12, %17 : vector<8x128xf32>
    %c0_3 = arith.constant 0 : index
    %c0_4 = arith.constant 0 : index
    %19 = vector.load %arg3[%c0_3, %c0_4] : memref<1x128xf32, #tpu.memory_space<vmem>>, vector<1x128xf32>
    %20 = vector.broadcast %19 : vector<1x128xf32> to vector<8x128xf32>
    %21 = arith.addf %18, %20 : vector<8x128xf32>
    %22 = math.tanh %21 : vector<8x128xf32>
    %23 = arith.truncf %22 : vector<8x128xf32> to vector<8x128xbf16>
    %c0_5 = arith.constant 0 : index
    %c0_6 = arith.constant 0 : index
    %24 = vector.load %arg4[%c0_5, %c0_6] : memref<128x128xbf16, #tpu.memory_space<vmem>>, vector<128x128xbf16>
    %cst = arith.constant dense<0.000000e+00> : vector<8x128xf32>
    %25 = tpu.matmul %23, %24, %cst {dimension_numbers = #tpu.dot_dimension_numbers<[1], [0], [0], [1], [0, 0, 1, 1], [], []>} : vector<8x128xbf16>, vector<128x128xbf16>, vector<8x128xf32> -> vector<8x128xf32>
    %c0_7 = arith.constant 0 : index
    %c0_8 = arith.constant 0 : index
    %26 = vector.load %arg5[%c0_7, %c0_8] : memref<1x128xf32, #tpu.memory_space<vmem>>, vector<1x128xf32>
    %27 = vector.broadcast %26 : vector<1x128xf32> to vector<8x128xf32>
    %28 = arith.addf %25, %27 : vector<8x128xf32>
    %29 = math.tanh %28 : vector<8x128xf32>
    %30 = arith.truncf %29 : vector<8x128xf32> to vector<8x128xbf16>
    %c0_9 = arith.constant 0 : index
    %c0_10 = arith.constant 0 : index
    %31 = vector.load %arg6[%c0_9, %c0_10] : memref<128x2xbf16, #tpu.memory_space<vmem>>, vector<128x2xbf16>
    %cst_11 = arith.constant dense<0.000000e+00> : vector<8x2xf32>
    %32 = tpu.matmul %30, %31, %cst_11 {dimension_numbers = #tpu.dot_dimension_numbers<[1], [0], [0], [1], [0, 0, 1, 1], [], []>} : vector<8x128xbf16>, vector<128x2xbf16>, vector<8x2xf32> -> vector<8x2xf32>
    %c0_12 = arith.constant 0 : index
    %c0_13 = arith.constant 0 : index
    %33 = vector.load %arg7[%c0_12, %c0_13] : memref<1x2xf32, #tpu.memory_space<vmem>>, vector<1x2xf32>
    %34 = vector.broadcast %33 : vector<1x2xf32> to vector<8x2xf32>
    %35 = arith.addf %32, %34 : vector<8x2xf32>
    %36 = vector.extract_strided_slice %35 {offsets = [0, 0], sizes = [8, 1], strides = [1, 1]} : vector<8x2xf32> to vector<8x1xf32>
    %37 = vector.extract_strided_slice %35 {offsets = [0, 1], sizes = [8, 1], strides = [1, 1]} : vector<8x2xf32> to vector<8x1xf32>
    %38 = arith.maximumf %36, %37 : vector<8x1xf32>
    %39 = arith.subf %36, %38 : vector<8x1xf32>
    %40 = math.exp %39 : vector<8x1xf32>
    %41 = arith.subf %37, %38 : vector<8x1xf32>
    %42 = math.exp %41 : vector<8x1xf32>
    %43 = arith.addf %40, %42 : vector<8x1xf32>
    %44 = math.log %43 : vector<8x1xf32>
    %45 = arith.addf %38, %44 : vector<8x1xf32>
    %46 = vector.broadcast %45 : vector<8x1xf32> to vector<8x2xf32>
    %47 = arith.subf %35, %46 : vector<8x2xf32>
    %c0_14 = arith.constant 0 : index
    %c0_15 = arith.constant 0 : index
    %48 = vector.load %arg8[%c0_14, %c0_15] : memref<8x2xf32, #tpu.memory_space<vmem>>, vector<8x2xf32>
    tpu.vector_store %arg8[%c0_14, %c0_15], %47 {strides = array<i32>} : memref<8x2xf32, #tpu.memory_space<vmem>>, vector<8x2xf32>,
    return
  }
  func.func @transform_0(%arg0: i32) -> (i32, i32) {
    %c0_i32 = arith.constant 0 : i32
    %c0_i32_0 = arith.constant 0 : i32
    return %arg0, %c0_i32 : i32, i32
  }
  func.func @transform_1(%arg0: i32) -> (i32, i32) {
    %c0_i32 = arith.constant 0 : i32
    %c0_i32_0 = arith.constant 0 : i32
    %c0_i32_1 = arith.constant 0 : i32
    return %c0_i32, %c0_i32_0 : i32, i32
  }
  func.func @transform_2(%arg0: i32) -> (i32, i32) {
    %c0_i32 = arith.constant 0 : i32
    %c0_i32_0 = arith.constant 0 : i32
    %c0_i32_1 = arith.constant 0 : i32
    return %c0_i32, %c0_i32_0 : i32, i32
  }
  func.func @transform_3(%arg0: i32) -> (i32, i32) {
    %c0_i32 = arith.constant 0 : i32
    %c0_i32_0 = arith.constant 0 : i32
    %c0_i32_1 = arith.constant 0 : i32
    return %c0_i32, %c0_i32_0 : i32, i32
  }
  func.func @transform_4(%arg0: i32) -> (i32, i32) {
    %c0_i32 = arith.constant 0 : i32
    %c0_i32_0 = arith.constant 0 : i32
    %c0_i32_1 = arith.constant 0 : i32
    return %c0_i32, %c0_i32_0 : i32, i32
  }
  func.func @transform_5(%arg0: i32) -> (i32, i32) {
    %c0_i32 = arith.constant 0 : i32
    %c0_i32_0 = arith.constant 0 : i32
    %c0_i32_1 = arith.constant 0 : i32
    return %c0_i32, %c0_i32_0 : i32, i32
  }
  func.func @transform_6(%arg0: i32) -> (i32, i32) {
    %c0_i32 = arith.constant 0 : i32
    %c0_i32_0 = arith.constant 0 : i32
    %c0_i32_1 = arith.constant 0 : i32
    return %c0_i32, %c0_i32_0 : i32, i32
  }
  func.func @transform_7(%arg0: i32) -> (i32, i32) {
    %c0_i32 = arith.constant 0 : i32
    %c0_i32_0 = arith.constant 0 : i32
    return %arg0, %c0_i32 : i32, i32
  }
}

</mosaic_0001>

<llo_original>
// kernel: tpu_custom_call.1
$region0: #{tpu_custom_call.1}
  #allocation0 [shape = 'u32[]', space=smem, size = 0x4, offset = 0x4, fixed_abs, tag = 'smem constant byte address 0x4 - core index']
  #allocation1 [shape = 'u32[144,128]{1,0:T(1,128)}', space=vmem, size = 0x12000, scoped, tag = 'internal scratch']
  %s0 = inlined_call_operand.vmem [shape: f32[8,3], index: 0, kind: input, shape index: {}]
  %s1 = inlined_call_operand.vmem [shape: f32[3,128], index: 1, kind: input, shape index: {}]
  %s2 = inlined_call_operand.vmem [shape: f32[1,128], index: 2, kind: input, shape index: {}]
  %s3 = inlined_call_operand.vmem [shape: bf16[128,128], index: 3, kind: input, shape index: {}]
  %s4 = inlined_call_operand.vmem [shape: f32[1,128], index: 4, kind: input, shape index: {}]
  %s5 = inlined_call_operand.vmem [shape: bf16[128,2], index: 5, kind: input, shape index: {}]
  %s6 = inlined_call_operand.vmem [shape: f32[1,2], index: 6, kind: input, shape index: {}]
  %s7 = inlined_call_operand.vmem [shape: f32[8,2], index: 7, kind: output, shape index: {}]
  %s8 = sld [smem:[#allocation0]]
  $region38: #{tpu_custom_call.1} parent=0
    _
  %s10 = ssub.s32 1, %s8
  %s11 = scalar_select 0, %s10, %s8
  // Predicated region
  $region2: #{tpu_custom_call.1} parent=0 // pred_check
    _
  $region3: #{tpu_custom_call.1} parent=0 // pred_check_branch
    %13 = sbr.rel (0) target = $region5
  $region4: #{tpu_custom_call.1} parent=0 // pred_region
    _
  $region5: #{tpu_custom_call.1} parent=0 // pred_fallthru
    _
  // Predicated region
  $region6: #{tpu_custom_call.1} parent=0 // pred_check
    _
  $region7: #{tpu_custom_call.1} parent=0 // pred_check_branch
    %15 = sbr.rel (0) target = $region9
  $region8: #{tpu_custom_call.1} parent=0 // pred_region
    _
  $region9: #{tpu_custom_call.1} parent=0 // pred_fallthru
    _
  // Predicated region
  $region10: #{tpu_custom_call.1} parent=0 // pred_check
    _
  $region11: #{tpu_custom_call.1} parent=0 // pred_check_branch
    %17 = sbr.rel (0) target = $region13
  $region12: #{tpu_custom_call.1} parent=0 // pred_region
    _
  $region13: #{tpu_custom_call.1} parent=0 // pred_fallthru
    _
  // Predicated region
  $region14: #{tpu_custom_call.1} parent=0 // pred_check
    _
  $region15: #{tpu_custom_call.1} parent=0 // pred_check_branch
    %19 = sbr.rel (0) target = $region17
  $region16: #{tpu_custom_call.1} parent=0 // pred_region
    _
  $region17: #{tpu_custom_call.1} parent=0 // pred_fallthru
    _
  // Predicated region
  $region18: #{tpu_custom_call.1} parent=0 // pred_check
    _
  $region19: #{tpu_custom_call.1} parent=0 // pred_check_branch
    %21 = sbr.rel (0) target = $region21
  $region20: #{tpu_custom_call.1} parent=0 // pred_region
    _
  $region21: #{tpu_custom_call.1} parent=0 // pred_fallthru
    _
  // Predicated region
  $region22: #{tpu_custom_call.1} parent=0 // pred_check
    _
  $region23: #{tpu_custom_call.1} parent=0 // pred_check_branch
    %23 = sbr.rel (0) target = $region25
  $region24: #{tpu_custom_call.1} parent=0 // pred_region
    _
  $region25: #{tpu_custom_call.1} parent=0 // pred_fallthru
    _
  // Predicated region
  $region26: #{tpu_custom_call.1} parent=0 // pred_check
    _
  $region27: #{tpu_custom_call.1} parent=0 // pred_check_branch
    %25 = sbr.rel (0) target = $region29
  $region28: #{tpu_custom_call.1} parent=0 // pred_region
    _
  $region29: #{tpu_custom_call.1} parent=0 // pred_fallthru
    _
  %v27 = vld [vmem:[%s0] sm:$0xff]
  %v28 = vld [vmem:[%s1] sm:$0x7]
  %30 = vset.pattern.permute.xlu0 0
  %31 = vperm.xlu0 %30, %v27
  %v32 = vpop.permute.xlu0 %31
  %v34 = vlaneseq
  %v35 = vshrl.u32 %v34, 7
  %v36 = vsub.s32 0, %v35
  %v37 = vrot.slane %v28, %v36
  %v38 = vmul.f32 %v32, %v37
  %39 = vset.pattern.permute.xlu0 1
  %40 = vperm.xlu0 %39, %v27
  %v41 = vpop.permute.xlu0 %40
  %v43 = vlaneseq
  %v44 = vshrl.u32 %v43, 7
  %v45 = vsub.s32 1, %v44
  %v46 = vrot.slane %v28, %v45
  %v47 = vmul.f32 %v41, %v46
  %v48 = vadd.f32 %v38, %v47
  %49 = vset.pattern.permute.xlu0 2
  %50 = vperm.xlu0 %49, %v27
  %v51 = vpop.permute.xlu0 %50
  %v53 = vlaneseq
  %v54 = vshrl.u32 %v53, 7
  %v55 = vsub.s32 2, %v54
  %v56 = vrot.slane %v28, %v55
  %v57 = vmul.f32 %v51, %v56
  %v58 = vadd.f32 %v48, %v57
  %v59 = vld [vmem:[%s2] sm:$0x1]
  %v61 = vlaneseq
  %v62 = vshrl.u32 %v61, 7
  %v63 = vsub.s32 0, %v62
  %v64 = vrot.slane %v59, %v63
  %v66 = vadd.f32 %v58, %v64
  %v67 = vtanh.pop %v66
  %v68 = vpack.c.bf16 %v67, %v67
  %v69 = vld [vmem:[%s3] sm:$0xf]
  %v70 = vld [vmem:[%s3 + $0x4] sm:$0xf]
  %v71 = vld [vmem:[%s3 + $0x8] sm:$0xf]
  %v72 = vld [vmem:[%s3 + $0xc] sm:$0xf]
  %v73 = vld [vmem:[%s3 + $0x10] sm:$0xf]
  %v74 = vld [vmem:[%s3 + $0x14] sm:$0xf]
  %v75 = vld [vmem:[%s3 + $0x18] sm:$0xf]
  %v76 = vld [vmem:[%s3 + $0x1c] sm:$0xf]
  %v77 = vld [vmem:[%s3 + $0x20] sm:$0xf]
  %v78 = vld [vmem:[%s3 + $0x24] sm:$0xf]
  %v79 = vld [vmem:[%s3 + $0x28] sm:$0xf]
  %v80 = vld [vmem:[%s3 + $0x2c] sm:$0xf]
  %v81 = vld [vmem:[%s3 + $0x30] sm:$0xf]
  %v82 = vld [vmem:[%s3 + $0x34] sm:$0xf]
  %v83 = vld [vmem:[%s3 + $0x38] sm:$0xf]
  %v84 = vld [vmem:[%s3 + $0x3c] sm:$0xf]
  %v85 = vld [vmem:[%s4] sm:$0x1]
  %v87 = vlaneseq
  %v88 = vshrl.u32 %v87, 7
  %v89 = vsub.s32 0, %v88
  %v90 = vrot.slane %v85, %v89
  %v108 = vunpack.c.l.b16 %v69
  %v109 = vunpack.c.l.b16 %v70
  %v110 = vunpack.c.l.b16 %v71
  %v111 = vunpack.c.l.b16 %v72
  %v112 = vunpack.c.l.b16 %v73
  %v113 = vunpack.c.l.b16 %v74
  %v114 = vunpack.c.l.b16 %v75
  %v115 = vunpack.c.l.b16 %v76
  %v116 = vunpack.c.l.b16 %v77
  %v117 = vunpack.c.l.b16 %v78
  %v118 = vunpack.c.l.b16 %v79
  %v119 = vunpack.c.l.b16 %v80
  %v120 = vunpack.c.l.b16 %v81
  %v121 = vunpack.c.l.b16 %v82
  %v122 = vunpack.c.l.b16 %v83
  %v123 = vunpack.c.l.b16 %v84
  %v124 = vpack.c.b16 %v109, %v108
  %v125 = vpack.c.b16 %v111, %v110
  %v126 = vpack.c.b16 %v113, %v112
  %v127 = vpack.c.b16 %v115, %v114
  %v128 = vpack.c.b16 %v117, %v116
  %v129 = vpack.c.b16 %v119, %v118
  %v130 = vpack.c.b16 %v121, %v120
  %v131 = vpack.c.b16 %v123, %v122
  %140 = vmatprep.subr.bf16.mxu0 0
  %141 = vmatpush1.bf16.msra.mxu0 %v124
  %142 = vmatprep.subr.bf16.mxu0 0
  %143 = vmatpush1.bf16.msra.mxu0 %v125
  %144 = vmatprep.subr.bf16.mxu0 0
  %145 = vmatpush1.bf16.msra.mxu0 %v126
  %146 = vmatprep.subr.bf16.mxu0 0
  %147 = vmatpush1.bf16.msra.mxu0 %v127
  %148 = vmatprep.subr.bf16.mxu0 0
  %149 = vmatpush1.bf16.msra.mxu0 %v128
  %150 = vmatprep.subr.bf16.mxu0 0
  %151 = vmatpush1.bf16.msra.mxu0 %v129
  %152 = vmatprep.subr.bf16.mxu0 0
  %153 = vmatpush1.bf16.msra.mxu0 %v130
  %154 = vmatprep.subr.bf16.mxu0 0
  %155 = vmatpush1.bf16.msra.mxu0 %v131
  %156 = vmatprep.subr.bf16.mxu0 0
  %157 = vmatpush1.bf16.msra.mxu0 0
  %158 = vmatprep.subr.bf16.mxu0 0
  %159 = vmatpush1.bf16.msra.mxu0 0
  %160 = vmatprep.subr.bf16.mxu0 0
  %161 = vmatpush1.bf16.msra.mxu0 0
  %162 = vmatprep.subr.bf16.mxu0 0
  %163 = vmatpush1.bf16.msra.mxu0 0
  %164 = vmatprep.subr.bf16.mxu0 0
  %165 = vmatpush1.bf16.msra.mxu0 0
  %166 = vmatprep.subr.bf16.mxu0 0
  %167 = vmatpush1.bf16.msra.mxu0 0
  %168 = vmatprep.subr.bf16.mxu0 0
  %169 = vmatpush1.bf16.msra.mxu0 0
  %170 = vmatprep.subr.bf16.mxu0 0
  %171 = vmatpush1.bf16.msra.mxu0 0
  %172 = vmatprep.mubr.bf16.mxu0 0
  %173 = vmatmul.mubr.bf16.gmra.mrb[0].mxu0 %v68
  %v174 = vpop.f32.mrb[0].mxu0
  %v175 = vadd.f32 %v90, %v174
  %v176 = vpop.f32.mrb[0].mxu0
  %v177 = vpop.f32.mrb[0].mxu0
  %v178 = vpop.f32.mrb[0].mxu0
  %179 = vdwg.mxu0
  %v180 = vtanh.pop %v175
  %v181 = vpack.c.bf16 %v180, %v180
  %v182 = vld [vmem:[%s5] sm:$0xf]
  %v183 = vld [vmem:[%s5 + $0x4] sm:$0xf]
  %v184 = vld [vmem:[%s5 + $0x8] sm:$0xf]
  %v185 = vld [vmem:[%s5 + $0xc] sm:$0xf]
  %v186 = vld [vmem:[%s5 + $0x10] sm:$0xf]
  %v187 = vld [vmem:[%s5 + $0x14] sm:$0xf]
  %v188 = vld [vmem:[%s5 + $0x18] sm:$0xf]
  %v189 = vld [vmem:[%s5 + $0x1c] sm:$0xf]
  %v190 = vld [vmem:[%s5 + $0x20] sm:$0xf]
  %v191 = vld [vmem:[%s5 + $0x24] sm:$0xf]
  %v192 = vld [vmem:[%s5 + $0x28] sm:$0xf]
  %v193 = vld [vmem:[%s5 + $0x2c] sm:$0xf]
  %v194 = vld [vmem:[%s5 + $0x30] sm:$0xf]
  %v195 = vld [vmem:[%s5 + $0x34] sm:$0xf]
  %v196 = vld [vmem:[%s5 + $0x38] sm:$0xf]
  %v197 = vld [vmem:[%s5 + $0x3c] sm:$0xf]
  %v198 = vld [vmem:[%s6] sm:$0x1]
  %v200 = vlaneseq
  %v201 = vshrl.u32 %v200, 7
  %v202 = vsub.s32 0, %v201
  %v203 = vrot.slane %v198, %v202
  %v221 = vunpack.c.l.b16 %v182
  %v222 = vunpack.c.l.b16 %v183
  %v223 = vunpack.c.l.b16 %v184
  %v224 = vunpack.c.l.b16 %v185
  %v225 = vunpack.c.l.b16 %v186
  %v226 = vunpack.c.l.b16 %v187
  %v227 = vunpack.c.l.b16 %v188
  %v228 = vunpack.c.l.b16 %v189
  %v229 = vunpack.c.l.b16 %v190
  %v230 = vunpack.c.l.b16 %v191
  %v231 = vunpack.c.l.b16 %v192
  %v232 = vunpack.c.l.b16 %v193
  %v233 = vunpack.c.l.b16 %v194
  %v234 = vunpack.c.l.b16 %v195
  %v235 = vunpack.c.l.b16 %v196
  %v236 = vunpack.c.l.b16 %v197
  %v237 = vpack.c.b16 %v222, %v221
  %v238 = vpack.c.b16 %v224, %v223
  %v239 = vpack.c.b16 %v226, %v225
  %v240 = vpack.c.b16 %v228, %v227
  %v241 = vpack.c.b16 %v230, %v229
  %v242 = vpack.c.b16 %v232, %v231
  %v243 = vpack.c.b16 %v234, %v233
  %v244 = vpack.c.b16 %v236, %v235
  %253 = vmatprep.subr.bf16.mxu0 0
  %254 = vmatpush1.bf16.msra.mxu0 %v237
  %255 = vmatprep.subr.bf16.mxu0 0
  %256 = vmatpush1.bf16.msra.mxu0 %v238
  %257 = vmatprep.subr.bf16.mxu0 0
  %258 = vmatpush1.bf16.msra.mxu0 %v239
  %259 = vmatprep.subr.bf16.mxu0 0
  %260 = vmatpush1.bf16.msra.mxu0 %v240
  %261 = vmatprep.subr.bf16.mxu0 0
  %262 = vmatpush1.bf16.msra.mxu0 %v241
  %263 = vmatprep.subr.bf16.mxu0 0
  %264 = vmatpush1.bf16.msra.mxu0 %v242
  %265 = vmatprep.subr.bf16.mxu0 0
  %266 = vmatpush1.bf16.msra.mxu0 %v243
  %267 = vmatprep.subr.bf16.mxu0 0
  %268 = vmatpush1.bf16.msra.mxu0 %v244
  %269 = vmatprep.subr.bf16.mxu0 0
  %270 = vmatpush1.bf16.msra.mxu0 0
  %271 = vmatprep.subr.bf16.mxu0 0
  %272 = vmatpush1.bf16.msra.mxu0 0
  %273 = vmatprep.subr.bf16.mxu0 0
  %274 = vmatpush1.bf16.msra.mxu0 0
  %275 = vmatprep.subr.bf16.mxu0 0
  %276 = vmatpush1.bf16.msra.mxu0 0
  %277 = vmatprep.subr.bf16.mxu0 0
  %278 = vmatpush1.bf16.msra.mxu0 0
  %279 = vmatprep.subr.bf16.mxu0 0
  %280 = vmatpush1.bf16.msra.mxu0 0
  %281 = vmatprep.subr.bf16.mxu0 0
  %282 = vmatpush1.bf16.msra.mxu0 0
  %283 = vmatprep.subr.bf16.mxu0 0
  %284 = vmatpush1.bf16.msra.mxu0 0
  %285 = vmatprep.mubr.bf16.mxu0 0
  %286 = vmatmul.mubr.bf16.gmra.mrb[0].mxu0 %v181
  %v287 = vpop.f32.mrb[0].mxu0
  %v288 = vadd.f32 %v203, %v287
  %v289 = vpop.f32.mrb[0].mxu0
  %v290 = vpop.f32.mrb[0].mxu0
  %v291 = vpop.f32.mrb[0].mxu0
  %292 = vdwg.mxu0
  %294 = vrot.lane.b32.xlu0 %v288, 127
  %v295 = vpop.permute.xlu0 %294
  %v297 = vmax.f32 %v288, %v295
  %v298 = vsub.f32 %v288, %v297
  %v299 = vmul.f32 %v298, 1.442695
  %v300 = vpow.pop %v299
  %302 = vrot.lane.b32.xlu0 %v297, 1
  %v303 = vpop.permute.xlu0 %302
  %v305 = vsub.f32 %v288, %v303
  %v306 = vmul.f32 %v305, 1.442695
  %v307 = vpow.pop %v306
  %309 = vrot.lane.b32.xlu0 %v307, 127
  %v310 = vpop.permute.xlu0 %309
  %v312 = vadd.f32 %v300, %v310
  %v313 = vlog2.pop %v312
  %v314 = vmul.f32 %v313, 0.6931472
  %v315 = vadd.f32 %v297, %v314
  %317 = vset.pattern.permute.xlu0 0
  %318 = vperm.xlu0 %317, %v315
  %v319 = vpop.permute.xlu0 %318
  %v321 = vsub.f32 %v288, %v319
  %vm322 = vcmask 15360
  %323 = vst.msk [vmem:[%s7] sm:$0xff] %vm322, %v321
  // Predicated region
  $region30: #{tpu_custom_call.1} parent=0 // pred_check
    _
  $region31: #{tpu_custom_call.1} parent=0 // pred_check_branch
    %325 = sbr.rel (0) target = $region33
  $region32: #{tpu_custom_call.1} parent=0 // pred_region
    _
  $region33: #{tpu_custom_call.1} parent=0 // pred_fallthru
    _
  // Predicated region
  $region34: #{tpu_custom_call.1} parent=0 // pred_check
    _
  $region35: #{tpu_custom_call.1} parent=0 // pred_check_branch
    %327 = sbr.rel (0) target = $region37
  $region36: #{tpu_custom_call.1} parent=0 // pred_region
    _
  $region37: #{tpu_custom_call.1} parent=0 // pred_fallthru
    _

</llo_original>
